<compile_context>
chip_gen: v5e
topology: v5e:2x2
jax: 0.10.0
libtpu: 0.0.40
codegen_flags: <defaults>
</compile_context>

<pallas_src>
import functools

import jax
import jax.numpy as jnp
from jax.experimental import pallas as pl
from jax.experimental.pallas import tpu as pltpu


def actor_kernel(x_ref, w1_ref, b1_ref, w2_ref, b2_ref, w3_ref, b3_ref,
                 o_ref, *, max_action):
    # fc1 + ReLU  (bf16 operands, f32 accumulate); x cast in-kernel.
    x = x_ref[...].astype(jnp.bfloat16)
    h1 = jnp.dot(x, w1_ref[...],
                 preferred_element_type=jnp.float32) + b1_ref[...]
    h1 = jnp.maximum(h1, 0.0).astype(jnp.bfloat16)
    # fc2 + ReLU
    h2 = jnp.dot(h1, w2_ref[...],
                 preferred_element_type=jnp.float32) + b2_ref[...]
    h2 = jnp.maximum(h2, 0.0).astype(jnp.bfloat16)
    # fc3 + tanh * max_action (f32 epilogue, narrow [tm, action_dim] store)
    h3 = jnp.dot(h2, w3_ref[...],
                 preferred_element_type=jnp.float32) + b3_ref[...]
    o_ref[...] = jnp.tanh(h3) * max_action


def prep_params(params):
    """One-time parameter prep, hoisted OUT of the forward path.

    Casts weights to bf16 (MXU operands); biases stay f32 as [1, out].
    Call once at init / after each optimizer update, not per forward."""
    w1, b1, w2, b2, w3, b3 = params
    return (w1.astype(jnp.bfloat16), b1.astype(jnp.float32),
            w2.astype(jnp.bfloat16), b2.astype(jnp.float32),
            w3.astype(jnp.bfloat16), b3.astype(jnp.float32))


def _choose_tm(batch):
    """Adaptive batch tile.

    * batch <= 8: one full-batch block (block dim == array dim is legal).
    * otherwise: multiple-of-8 tile, capped at 512 rows, sized so the grid has
      at least 2 steps (both TensorCores on v7x get work)."""
    if batch <= 8:
        return batch
    half = pl.cdiv(batch, 2)
    tm = pl.cdiv(half, 8) * 8
    return min(512, tm)


@functools.partial(jax.jit, static_argnames=("max_action",))
def actor_forward(state, prepped, max_action):
    """state: [B, state_dim] f32, prepped: output of prep_params
    -> actions: [B, action_dim] f32."""
    w1, b1, w2, b2, w3, b3 = prepped
    B, state_dim = state.shape
    H = w1.shape[1]                  # hidden width (256, multiple of 128)
    action_dim = w3.shape[1]

    tm = _choose_tm(B)
    grid = (pl.cdiv(B, tm),)         # edge block (if any): rows are
                                     # independent; OOB output rows dropped.

    return pl.pallas_call(
        functools.partial(actor_kernel, max_action=float(max_action)),
        out_shape=jax.ShapeDtypeStruct((B, action_dim), jnp.float32),
        grid_spec=pltpu.PrefetchScalarGridSpec(
            num_scalar_prefetch=0,
            grid=grid,
            in_specs=[
                pl.BlockSpec((tm, state_dim), lambda i: (i, 0)),  # x (pipelined)
                pl.BlockSpec((state_dim, H), lambda i: (0, 0)),   # w1 (resident)
                pl.BlockSpec((1, H),         lambda i: (0, 0)),   # b1
                pl.BlockSpec((H, H),         lambda i: (0, 0)),   # w2
                pl.BlockSpec((1, H),         lambda i: (0, 0)),   # b2
                pl.BlockSpec((H, action_dim), lambda i: (0, 0)),  # w3
                pl.BlockSpec((1, action_dim), lambda i: (0, 0)),  # b3
            ],
            out_specs=pl.BlockSpec((tm, action_dim), lambda i: (i, 0)),
        ),
        compiler_params=pltpu.CompilerParams(
            dimension_semantics=("parallel",)),
    )(state, w1, b1, w2, b2, w3, b3)


def init_params(key, state_dim, action_dim, hidden=256):
    """PyTorch Linear-style init: U(-1/sqrt(fan_in), 1/sqrt(fan_in)).
    Weights stored as [in, out] (transposed vs. PyTorch's [out, in])."""
    ks = jax.random.split(key, 6)

    def lin(kw, kb, fan_in, fan_out):
        bound = 1.0 / jnp.sqrt(fan_in)
        w = jax.random.uniform(kw, (fan_in, fan_out), jnp.float32, -bound, bound)
        b = jax.random.uniform(kb, (1, fan_out), jnp.float32, -bound, bound)
        return w, b

    w1, b1 = lin(ks[0], ks[1], state_dim, hidden)
    w2, b2 = lin(ks[2], ks[3], hidden, hidden)
    w3, b3 = lin(ks[4], ks[5], hidden, action_dim)
    return (w1, b1, w2, b2, w3, b3)


def actor_reference_f32(state, params, max_action):
    """Pure-f32 reference (matches the PyTorch module exactly)."""
    w1, b1, w2, b2, w3, b3 = params
    h1 = jnp.maximum(state @ w1 + b1, 0.0)
    h2 = jnp.maximum(h1 @ w2 + b2, 0.0)
    return jnp.tanh(h2 @ w3 + b3) * max_action


def actor_reference_bf16(state, params, max_action):
    """Reference that mimics the kernel's bf16-operand / f32-accumulate math."""
    w1, b1, w2, b2, w3, b3 = params
    x = state.astype(jnp.bfloat16)
    h1 = jnp.dot(x, w1.astype(jnp.bfloat16),
                 preferred_element_type=jnp.float32) + b1
    h1 = jnp.maximum(h1, 0.0).astype(jnp.bfloat16)
    h2 = jnp.dot(h1, w2.astype(jnp.bfloat16),
                 preferred_element_type=jnp.float32) + b2
    h2 = jnp.maximum(h2, 0.0).astype(jnp.bfloat16)
    h3 = jnp.dot(h2, w3.astype(jnp.bfloat16),
                 preferred_element_type=jnp.float32) + b3
    return jnp.tanh(h3) * max_action


if __name__ == "__main__":
    # Hopper-v5: state_dim = 11, action_dim = 3, max_action = 1.0
    state_dim, action_dim, hidden = 11, 3, 256
    max_action = 1.0

    key = jax.random.PRNGKey(0)
    k_x1, k_x2, k_p = jax.random.split(key, 3)
    params = init_params(k_p, state_dim, action_dim, hidden)
    prepped = jax.tree_util.tree_map(jax.block_until_ready, prep_params(params))

    # Small per-step batch (as in the acting loop) -> single full-batch block.
    state_small = jax.random.normal(k_x1, (2, state_dim), dtype=jnp.float32)
    out_small = jax.block_until_ready(
        actor_forward(state_small, prepped, max_action))
    assert out_small.shape == (2, action_dim)
    assert jnp.allclose(out_small,
                        actor_reference_bf16(state_small, params, max_action),
                        atol=5e-3, rtol=5e-3), "mismatch vs bf16 reference"
    assert jnp.allclose(out_small,
                        actor_reference_f32(state_small, params, max_action),
                        atol=3e-2, rtol=3e-2), "mismatch vs f32 reference"

    # Larger (non-multiple-of-tile) batch -> exercises the 2-step grid,
    # VMEM-resident weights, and the masked edge block.
    state_big = jax.random.normal(k_x2, (300, state_dim), dtype=jnp.float32)
    out_big = jax.block_until_ready(
        actor_forward(state_big, prepped, max_action))
    assert out_big.shape == (300, action_dim)
    assert jnp.allclose(out_big,
                        actor_reference_bf16(state_big, params, max_action),
                        atol=5e-3, rtol=5e-3), "mismatch vs bf16 reference"
    assert jnp.allclose(out_big,
                        actor_reference_f32(state_big, params, max_action),
                        atol=3e-2, rtol=3e-2), "mismatch vs f32 reference"

    print("KERNEL_OK")
</pallas_src>

<mosaic_0001>
module attributes {stable_mosaic.version = 11 : i64} {
  func.func @actor_kernel(%arg0: i32, %arg1: memref<2x11xf32, #tpu.memory_space<vmem>>, %arg2: memref<11x256xbf16, #tpu.memory_space<vmem>>, %arg3: memref<1x256xf32, #tpu.memory_space<vmem>>, %arg4: memref<256x256xbf16, #tpu.memory_space<vmem>>, %arg5: memref<1x256xf32, #tpu.memory_space<vmem>>, %arg6: memref<256x3xbf16, #tpu.memory_space<vmem>>, %arg7: memref<1x3xf32, #tpu.memory_space<vmem>>, %arg8: memref<2x3xf32, #tpu.memory_space<vmem>>) attributes {dimension_semantics = [#tpu.dimension_semantics<parallel>], iteration_bounds = array<i64: 1>, scalar_prefetch = 0 : i64, scratch_operands = 0 : i64, tpu.core_type = #tpu.core_type<tc>, window_params = [{transform_indices = @transform_0, window_bounds = array<i64: 2, 11>}, {pipeline_mode = #tpu.pipeline_mode<synchronous>, transform_indices = @transform_1, window_bounds = array<i64: 11, 256>}, {pipeline_mode = #tpu.pipeline_mode<synchronous>, transform_indices = @transform_2, window_bounds = array<i64: 1, 256>}, {pipeline_mode = #tpu.pipeline_mode<synchronous>, transform_indices = @transform_3, window_bounds = array<i64: 256, 256>}, {pipeline_mode = #tpu.pipeline_mode<synchronous>, transform_indices = @transform_4, window_bounds = array<i64: 1, 256>}, {pipeline_mode = #tpu.pipeline_mode<synchronous>, transform_indices = @transform_5, window_bounds = array<i64: 256, 3>}, {pipeline_mode = #tpu.pipeline_mode<synchronous>, transform_indices = @transform_6, window_bounds = array<i64: 1, 3>}, {transform_indices = @transform_7, window_bounds = array<i64: 2, 3>}]} {
    %c0 = arith.constant 0 : index
    %c0_0 = arith.constant 0 : index
    %0 = vector.load %arg1[%c0, %c0_0] : memref<2x11xf32, #tpu.memory_space<vmem>>, vector<2x11xf32>
    %1 = arith.truncf %0 : vector<2x11xf32> to vector<2x11xbf16>
    %c0_1 = arith.constant 0 : index
    %c0_2 = arith.constant 0 : index
    %2 = vector.load %arg2[%c0_1, %c0_2] : memref<11x256xbf16, #tpu.memory_space<vmem>>, vector<11x256xbf16>
    %cst = arith.constant dense<0.000000e+00> : vector<2x256xf32>
    %3 = tpu.matmul %1, %2, %cst {dimension_numbers = #tpu.dot_dimension_numbers<[1], [0], [0], [1], [0, 0, 1, 1], [], []>} : vector<2x11xbf16>, vector<11x256xbf16>, vector<2x256xf32> -> vector<2x256xf32>
    %c0_3 = arith.constant 0 : index
    %c0_4 = arith.constant 0 : index
    %4 = vector.load %arg3[%c0_3, %c0_4] : memref<1x256xf32, #tpu.memory_space<vmem>>, vector<1x256xf32>
    %5 = vector.broadcast %4 : vector<1x256xf32> to vector<2x256xf32>
    %6 = arith.addf %3, %5 : vector<2x256xf32>
    %cst_5 = arith.constant 0.000000e+00 : f32
    %7 = vector.broadcast %cst_5 : f32 to vector<2x256xf32>
    %8 = arith.maximumf %6, %7 : vector<2x256xf32>
    %9 = arith.truncf %8 : vector<2x256xf32> to vector<2x256xbf16>
    %c0_6 = arith.constant 0 : index
    %c0_7 = arith.constant 0 : index
    %10 = vector.load %arg4[%c0_6, %c0_7] : memref<256x256xbf16, #tpu.memory_space<vmem>>, vector<256x256xbf16>
    %cst_8 = arith.constant dense<0.000000e+00> : vector<2x256xf32>
    %11 = tpu.matmul %9, %10, %cst_8 {dimension_numbers = #tpu.dot_dimension_numbers<[1], [0], [0], [1], [0, 0, 1, 1], [], []>} : vector<2x256xbf16>, vector<256x256xbf16>, vector<2x256xf32> -> vector<2x256xf32>
    %c0_9 = arith.constant 0 : index
    %c0_10 = arith.constant 0 : index
    %12 = vector.load %arg5[%c0_9, %c0_10] : memref<1x256xf32, #tpu.memory_space<vmem>>, vector<1x256xf32>
    %13 = vector.broadcast %12 : vector<1x256xf32> to vector<2x256xf32>
    %14 = arith.addf %11, %13 : vector<2x256xf32>
    %cst_11 = arith.constant 0.000000e+00 : f32
    %15 = vector.broadcast %cst_11 : f32 to vector<2x256xf32>
    %16 = arith.maximumf %14, %15 : vector<2x256xf32>
    %17 = arith.truncf %16 : vector<2x256xf32> to vector<2x256xbf16>
    %c0_12 = arith.constant 0 : index
    %c0_13 = arith.constant 0 : index
    %18 = vector.load %arg6[%c0_12, %c0_13] : memref<256x3xbf16, #tpu.memory_space<vmem>>, vector<256x3xbf16>
    %cst_14 = arith.constant dense<0.000000e+00> : vector<2x3xf32>
    %19 = tpu.matmul %17, %18, %cst_14 {dimension_numbers = #tpu.dot_dimension_numbers<[1], [0], [0], [1], [0, 0, 1, 1], [], []>} : vector<2x256xbf16>, vector<256x3xbf16>, vector<2x3xf32> -> vector<2x3xf32>
    %c0_15 = arith.constant 0 : index
    %c0_16 = arith.constant 0 : index
    %20 = vector.load %arg7[%c0_15, %c0_16] : memref<1x3xf32, #tpu.memory_space<vmem>>, vector<1x3xf32>
    %21 = vector.broadcast %20 : vector<1x3xf32> to vector<2x3xf32>
    %22 = arith.addf %19, %21 : vector<2x3xf32>
    %23 = math.tanh %22 : vector<2x3xf32>
    %cst_17 = arith.constant 1.000000e+00 : f32
    %24 = vector.broadcast %cst_17 : f32 to vector<2x3xf32>
    %25 = arith.mulf %23, %24 : vector<2x3xf32>
    %c0_18 = arith.constant 0 : index
    %c0_19 = arith.constant 0 : index
    %26 = vector.load %arg8[%c0_18, %c0_19] : memref<2x3xf32, #tpu.memory_space<vmem>>, vector<2x3xf32>
    tpu.vector_store %arg8[%c0_18, %c0_19], %25 {strides = array<i32>} : memref<2x3xf32, #tpu.memory_space<vmem>>, vector<2x3xf32>,
    return
  }
  func.func @transform_0(%arg0: i32) -> (i32, i32) {
    %c0_i32 = arith.constant 0 : i32
    %c0_i32_0 = arith.constant 0 : i32
    return %arg0, %c0_i32 : i32, i32
  }
  func.func @transform_1(%arg0: i32) -> (i32, i32) {
    %c0_i32 = arith.constant 0 : i32
    %c0_i32_0 = arith.constant 0 : i32
    %c0_i32_1 = arith.constant 0 : i32
    return %c0_i32, %c0_i32_0 : i32, i32
  }
  func.func @transform_2(%arg0: i32) -> (i32, i32) {
    %c0_i32 = arith.constant 0 : i32
    %c0_i32_0 = arith.constant 0 : i32
    %c0_i32_1 = arith.constant 0 : i32
    return %c0_i32, %c0_i32_0 : i32, i32
  }
  func.func @transform_3(%arg0: i32) -> (i32, i32) {
    %c0_i32 = arith.constant 0 : i32
    %c0_i32_0 = arith.constant 0 : i32
    %c0_i32_1 = arith.constant 0 : i32
    return %c0_i32, %c0_i32_0 : i32, i32
  }
  func.func @transform_4(%arg0: i32) -> (i32, i32) {
    %c0_i32 = arith.constant 0 : i32
    %c0_i32_0 = arith.constant 0 : i32
    %c0_i32_1 = arith.constant 0 : i32
    return %c0_i32, %c0_i32_0 : i32, i32
  }
  func.func @transform_5(%arg0: i32) -> (i32, i32) {
    %c0_i32 = arith.constant 0 : i32
    %c0_i32_0 = arith.constant 0 : i32
    %c0_i32_1 = arith.constant 0 : i32
    return %c0_i32, %c0_i32_0 : i32, i32
  }
  func.func @transform_6(%arg0: i32) -> (i32, i32) {
    %c0_i32 = arith.constant 0 : i32
    %c0_i32_0 = arith.constant 0 : i32
    %c0_i32_1 = arith.constant 0 : i32
    return %c0_i32, %c0_i32_0 : i32, i32
  }
  func.func @transform_7(%arg0: i32) -> (i32, i32) {
    %c0_i32 = arith.constant 0 : i32
    %c0_i32_0 = arith.constant 0 : i32
    return %arg0, %c0_i32 : i32, i32
  }
}

</mosaic_0001>

<llo_original>
// kernel: actor_forward.1
$region0: #{actor_forward.1}
  #allocation0 [shape = 'u32[]', space=smem, size = 0x4, offset = 0x4, fixed_abs, tag = 'smem constant byte address 0x4 - core index']
  #allocation1 [shape = 'u32[72,128]{1,0:T(1,128)}', space=vmem, size = 0x9000, scoped, tag = 'internal scratch']
  %s0 = inlined_call_operand.vmem [shape: f32[2,11], index: 0, kind: input, shape index: {}]
  %s1 = inlined_call_operand.vmem [shape: bf16[11,256], index: 1, kind: input, shape index: {}]
  %s2 = inlined_call_operand.vmem [shape: f32[1,256], index: 2, kind: input, shape index: {}]
  %s3 = inlined_call_operand.hbm [shape: bf16[256,256], index: 3, kind: input, shape index: {}]
  %s4 = inlined_call_operand.vmem [shape: f32[1,256], index: 4, kind: input, shape index: {}]
  %s5 = inlined_call_operand.vmem [shape: bf16[256,3], index: 5, kind: input, shape index: {}]
  %s6 = inlined_call_operand.vmem [shape: f32[1,3], index: 6, kind: input, shape index: {}]
  %s7 = inlined_call_operand.hbm [shape: f32[2,3], index: 7, kind: output, shape index: {}]
  %s8 = sld [smem:[#allocation0]]
  $region42: #{actor_forward.1} parent=0
    _
  %s10 = ssub.s32 1, %s8
  %s11 = scalar_select 0, %s10, %s8
  $region1: #{actor_forward.1} parent=0
    #allocation2 [shape = 'u8[131072]{0}', space=vmem, size = 0x20000, scoped, tag = 'input window, operand 3, single buffered']
    #allocation3 [shape = 's32[1]{0}', space=sflag, size = 0x4, scoped, tag = 'scoped memory for actor_forward.1']
    #allocation4 [shape = 's32[1]{0}', space=sflag, size = 0x4, scoped, tag = 'scoped memory for actor_forward.1']
    #allocation5 [shape = 'u8[1024]{0}', space=vmem, size = 0x400, scoped, tag = 'output window, operand 0, single buffered']
    %12 = vsyncpa [#allocation3], 0
    %13 = vsyncpa [#allocation4], 0
    // Predicated region
    $region2: #{actor_forward.1} parent=1 // pred_check
      _
    $region3: #{actor_forward.1} parent=1 // pred_check_branch
      %15 = sbr.rel (0) target = $region5
    $region4: #{actor_forward.1} parent=1 // pred_region
      _
    $region5: #{actor_forward.1} parent=1 // pred_fallthru
      _
    // Predicated region
    $region6: #{actor_forward.1} parent=1 // pred_check
      _
    $region7: #{actor_forward.1} parent=1 // pred_check_branch
      %17 = sbr.rel (0) target = $region9
    $region8: #{actor_forward.1} parent=1 // pred_region
      _
    $region9: #{actor_forward.1} parent=1 // pred_fallthru
      _
    // Predicated region
    $region10: #{actor_forward.1} parent=1 // pred_check
      _
    $region11: #{actor_forward.1} parent=1 // pred_check_branch
      %19 = sbr.rel (0) target = $region13
    $region12: #{actor_forward.1} parent=1 // pred_region
      _
    $region13: #{actor_forward.1} parent=1 // pred_fallthru
      _
    // Predicated region
    $region14: #{actor_forward.1} parent=1 // pred_check
      _
    $region15: #{actor_forward.1} parent=1 // pred_check_branch
      %21 = sbr.rel (0) target = $region17
    $region16: #{actor_forward.1} parent=1 // pred_region
      %23 = vsyncadd [#allocation3], 0
      %s24 = sshll.u32 %s3, 4
      %s25 = int_to_ptr.hbm [resolvable:$true] %s24
      %s26 = sshll.u32 [#allocation2], 4
      %s27 = int_to_ptr.vmem [resolvable:$true] %s26
      %32 = dma.hbm_to_vmem [thread:$0]  %s25, 4096, %s27, [#allocation3], 128, 128, 8
    $region17: #{actor_forward.1} parent=1 // pred_fallthru
      _
    // Predicated region
    $region18: #{actor_forward.1} parent=1 // pred_check
      _
    $region19: #{actor_forward.1} parent=1 // pred_check_branch
      %34 = sbr.rel (0) target = $region21
    $region20: #{actor_forward.1} parent=1 // pred_region
      _
    $region21: #{actor_forward.1} parent=1 // pred_fallthru
      _
    // Predicated region
    $region22: #{actor_forward.1} parent=1 // pred_check
      _
    $region23: #{actor_forward.1} parent=1 // pred_check_branch
      %36 = sbr.rel (0) target = $region25
    $region24: #{actor_forward.1} parent=1 // pred_region
      _
    $region25: #{actor_forward.1} parent=1 // pred_fallthru
      _
    // Predicated region
    $region26: #{actor_forward.1} parent=1 // pred_check
      _
    $region27: #{actor_forward.1} parent=1 // pred_check_branch
      %38 = sbr.rel (0) target = $region29
    $region28: #{actor_forward.1} parent=1 // pred_region
      _
    $region29: #{actor_forward.1} parent=1 // pred_fallthru
      _
    // Predicated region
    $region30: #{actor_forward.1} parent=1 // pred_check
      _
    $region31: #{actor_forward.1} parent=1 // pred_check_branch
      %40 = sbr.rel (0) target = $region33
    $region32: #{actor_forward.1} parent=1 // pred_region
      %42 = dma.done [#allocation3], 4096
    $region33: #{actor_forward.1} parent=1 // pred_fallthru
      _
    %v44 = vld [vmem:[%s0] sm:$0x3]
    %v45 = vpack.c.bf16 %v44, %v44
    %v46 = vld [vmem:[%s1] sm:$0xff]
    %v47 = vld [vmem:[%s1 + $0x8] sm:$0x33]
    %v48 = vld [vmem:[%s2] sm:$0x3]
    %v50 = vperm.slane %v48, 0
    %v51 = vperm.slane %v48, 1
    %v56 = vunpack.c.l.b16 %v46
    %v57 = vunpack.c.h.b16 %v46
    %v58 = vunpack.c.l.b16 %v47
    %v59 = vunpack.c.h.b16 %v47
    %v60 = vpack.c.b16 %v58, %v56
    %v61 = vpack.c.b16 %v59, %v57
    %vm62 = vcmask 89088
    %v64 = vsel %vm62, %v45, 0
    %vm66 = vcmask 1044480
    %vm67 = vcmask 1045504
    %v68 = vsel %vm66, 4294967295, 65535
    %v69 = vsel %vm67, %v68, 0
    %v71 = vand.u32 %v60, %v69
    %v74 = vand.u32 %v61, %v69
    %76 = vmatpush.bf16.msra.mxu0 0
    %77 = vmatpush.bf16.msra.mxu0 0
    %78 = vmatpush.bf16.msra.mxu0 0
    %79 = vmatpush.bf16.msra.mxu0 0
    %80 = vmatpush.bf16.msra.mxu0 0
    %81 = vmatpush.bf16.msra.mxu0 0
    %82 = vmatpush.bf16.msra.mxu0 0
    %83 = vmatpush.bf16.msra.mxu0 %v71
    %84 = vmatmul.bf16.gmra.mxu0 %v64
    %v85 = vpop.f32.mrf.mxu0
    %v86 = vadd.f32 %v50, %v85
    %v87 = vpop.f32.mrf.mxu0
    %88 = vdwg.mxu0
    %89 = vmatpush.bf16.msra.mxu0 0
    %90 = vmatpush.bf16.msra.mxu0 0
    %91 = vmatpush.bf16.msra.mxu0 0
    %92 = vmatpush.bf16.msra.mxu0 0
    %93 = vmatpush.bf16.msra.mxu0 0
    %94 = vmatpush.bf16.msra.mxu0 0
    %95 = vmatpush.bf16.msra.mxu0 0
    %96 = vmatpush.bf16.msra.mxu0 %v74
    %97 = vmatmul.bf16.gmra.mxu0 %v64
    %v98 = vpop.f32.mrf.mxu0
    %v99 = vadd.f32 %v51, %v98
    %v100 = vpop.f32.mrf.mxu0
    %101 = vdwg.mxu0
    %v102 = vmax.f32 %v86, 0.0
    %v103 = vmax.f32 %v99, 0.0
    %v104 = vpack.c.bf16 %v102, %v102
    %v105 = vpack.c.bf16 %v103, %v103
    %v106 = vld [vmem:[#allocation2] sm:$0xff]
    %v107 = vld [vmem:[#allocation2 + $0x8] sm:$0xff]
    %v108 = vld [vmem:[#allocation2 + $0x10] sm:$0xff]
    %v109 = vld [vmem:[#allocation2 + $0x18] sm:$0xff]
    %v110 = vld [vmem:[#allocation2 + $0x20] sm:$0xff]
    %v111 = vld [vmem:[#allocation2 + $0x28] sm:$0xff]
    %v112 = vld [vmem:[#allocation2 + $0x30] sm:$0xff]
    %v113 = vld [vmem:[#allocation2 + $0x38] sm:$0xff]
    %v114 = vld [vmem:[#allocation2 + $0x40] sm:$0xff]
    %v115 = vld [vmem:[#allocation2 + $0x48] sm:$0xff]
    %v116 = vld [vmem:[#allocation2 + $0x50] sm:$0xff]
    %v117 = vld [vmem:[#allocation2 + $0x58] sm:$0xff]
    %v118 = vld [vmem:[#allocation2 + $0x60] sm:$0xff]
    %v119 = vld [vmem:[#allocation2 + $0x68] sm:$0xff]
    %v120 = vld [vmem:[#allocation2 + $0x70] sm:$0xff]
    %v121 = vld [vmem:[#allocation2 + $0x78] sm:$0xff]
    %v122 = vld [vmem:[#allocation2 + $0x80] sm:$0xff]
    %v123 = vld [vmem:[#allocation2 + $0x88] sm:$0xff]
    %v124 = vld [vmem:[#allocation2 + $0x90] sm:$0xff]
    %v125 = vld [vmem:[#allocation2 + $0x98] sm:$0xff]
    %v126 = vld [vmem:[#allocation2 + $0xa0] sm:$0xff]
    %v127 = vld [vmem:[#allocation2 + $0xa8] sm:$0xff]
    %v128 = vld [vmem:[#allocation2 + $0xb0] sm:$0xff]
    %v129 = vld [vmem:[#allocation2 + $0xb8] sm:$0xff]
    %v130 = vld [vmem:[#allocation2 + $0xc0] sm:$0xff]
    %v131 = vld [vmem:[#allocation2 + $0xc8] sm:$0xff]
    %v132 = vld [vmem:[#allocation2 + $0xd0] sm:$0xff]
    %v133 = vld [vmem:[#allocation2 + $0xd8] sm:$0xff]
    %v134 = vld [vmem:[#allocation2 + $0xe0] sm:$0xff]
    %v135 = vld [vmem:[#allocation2 + $0xe8] sm:$0xff]
    %v136 = vld [vmem:[#allocation2 + $0xf0] sm:$0xff]
    %v137 = vld [vmem:[#allocation2 + $0xf8] sm:$0xff]
    %v138 = vld [vmem:[%s4] sm:$0x3]
    %v140 = vperm.slane %v138, 0
    %v141 = vperm.slane %v138, 1
    %v176 = vunpack.c.l.b16 %v106
    %v177 = vunpack.c.h.b16 %v106
    %v178 = vunpack.c.l.b16 %v107
    %v179 = vunpack.c.h.b16 %v107
    %v180 = vunpack.c.l.b16 %v108
    %v181 = vunpack.c.h.b16 %v108
    %v182 = vunpack.c.l.b16 %v109
    %v183 = vunpack.c.h.b16 %v109
    %v184 = vunpack.c.l.b16 %v110
    %v185 = vunpack.c.h.b16 %v110
    %v186 = vunpack.c.l.b16 %v111
    %v187 = vunpack.c.h.b16 %v111
    %v188 = vunpack.c.l.b16 %v112
    %v189 = vunpack.c.h.b16 %v112
    %v190 = vunpack.c.l.b16 %v113
    %v191 = vunpack.c.h.b16 %v113
    %v192 = vunpack.c.l.b16 %v114
    %v193 = vunpack.c.h.b16 %v114
    %v194 = vunpack.c.l.b16 %v115
    %v195 = vunpack.c.h.b16 %v115
    %v196 = vunpack.c.l.b16 %v116
    %v197 = vunpack.c.h.b16 %v116
    %v198 = vunpack.c.l.b16 %v117
    %v199 = vunpack.c.h.b16 %v117
    %v200 = vunpack.c.l.b16 %v118
    %v201 = vunpack.c.h.b16 %v118
    %v202 = vunpack.c.l.b16 %v119
    %v203 = vunpack.c.h.b16 %v119
    %v204 = vunpack.c.l.b16 %v120
    %v205 = vunpack.c.h.b16 %v120
    %v206 = vunpack.c.l.b16 %v121
    %v207 = vunpack.c.h.b16 %v121
    %v208 = vunpack.c.l.b16 %v122
    %v209 = vunpack.c.h.b16 %v122
    %v210 = vunpack.c.l.b16 %v123
    %v211 = vunpack.c.h.b16 %v123
    %v212 = vunpack.c.l.b16 %v124
    %v213 = vunpack.c.h.b16 %v124
    %v214 = vunpack.c.l.b16 %v125
    %v215 = vunpack.c.h.b16 %v125
    %v216 = vunpack.c.l.b16 %v126
    %v217 = vunpack.c.h.b16 %v126
    %v218 = vunpack.c.l.b16 %v127
    %v219 = vunpack.c.h.b16 %v127
    %v220 = vunpack.c.l.b16 %v128
    %v221 = vunpack.c.h.b16 %v128
    %v222 = vunpack.c.l.b16 %v129
    %v223 = vunpack.c.h.b16 %v129
    %v224 = vunpack.c.l.b16 %v130
    %v225 = vunpack.c.h.b16 %v130
    %v226 = vunpack.c.l.b16 %v131
    %v227 = vunpack.c.h.b16 %v131
    %v228 = vunpack.c.l.b16 %v132
    %v229 = vunpack.c.h.b16 %v132
    %v230 = vunpack.c.l.b16 %v133
    %v231 = vunpack.c.h.b16 %v133
    %v232 = vunpack.c.l.b16 %v134
    %v233 = vunpack.c.h.b16 %v134
    %v234 = vunpack.c.l.b16 %v135
    %v235 = vunpack.c.h.b16 %v135
    %v236 = vunpack.c.l.b16 %v136
    %v237 = vunpack.c.h.b16 %v136
    %v238 = vunpack.c.l.b16 %v137
    %v239 = vunpack.c.h.b16 %v137
    %v240 = vpack.c.b16 %v178, %v176
    %v241 = vpack.c.b16 %v179, %v177
    %v242 = vpack.c.b16 %v182, %v180
    %v243 = vpack.c.b16 %v183, %v181
    %v244 = vpack.c.b16 %v186, %v184
    %v245 = vpack.c.b16 %v187, %v185
    %v246 = vpack.c.b16 %v190, %v188
    %v247 = vpack.c.b16 %v191, %v189
    %v248 = vpack.c.b16 %v194, %v192
    %v249 = vpack.c.b16 %v195, %v193
    %v250 = vpack.c.b16 %v198, %v196
    %v251 = vpack.c.b16 %v199, %v197
    %v252 = vpack.c.b16 %v202, %v200
    %v253 = vpack.c.b16 %v203, %v201
    %v254 = vpack.c.b16 %v206, %v204
    %v255 = vpack.c.b16 %v207, %v205
    %v256 = vpack.c.b16 %v210, %v208
    %v257 = vpack.c.b16 %v211, %v209
    %v258 = vpack.c.b16 %v214, %v212
    %v259 = vpack.c.b16 %v215, %v213
    %v260 = vpack.c.b16 %v218, %v216
    %v261 = vpack.c.b16 %v219, %v217
    %v262 = vpack.c.b16 %v222, %v220
    %v263 = vpack.c.b16 %v223, %v221
    %v264 = vpack.c.b16 %v226, %v224
    %v265 = vpack.c.b16 %v227, %v225
    %v266 = vpack.c.b16 %v230, %v228
    %v267 = vpack.c.b16 %v231, %v229
    %v268 = vpack.c.b16 %v234, %v232
    %v269 = vpack.c.b16 %v235, %v233
    %v270 = vpack.c.b16 %v238, %v236
    %v271 = vpack.c.b16 %v239, %v237
    %304 = vmatpush.bf16.msra.mxu0 %v254
    %305 = vmatpush.bf16.msra.mxu0 %v252
    %306 = vmatpush.bf16.msra.mxu0 %v250
    %307 = vmatpush.bf16.msra.mxu0 %v248
    %308 = vmatpush.bf16.msra.mxu0 %v246
    %309 = vmatpush.bf16.msra.mxu0 %v244
    %310 = vmatpush.bf16.msra.mxu0 %v242
    %311 = vmatpush.bf16.msra.mxu0 %v240
    %312 = vmatmul.bf16.gmra.mxu0 %v104
    %v313 = vpop.f32.mrf.mxu0
    %v314 = vadd.f32 %v140, %v313
    %v315 = vpop.f32.mrf.mxu0
    %316 = vdwg.mxu0
    %317 = vmatpush.bf16.msra.mxu0 %v270
    %318 = vmatpush.bf16.msra.mxu0 %v268
    %319 = vmatpush.bf16.msra.mxu0 %v266
    %320 = vmatpush.bf16.msra.mxu0 %v264
    %321 = vmatpush.bf16.msra.mxu0 %v262
    %322 = vmatpush.bf16.msra.mxu0 %v260
    %323 = vmatpush.bf16.msra.mxu0 %v258
    %324 = vmatpush.bf16.msra.mxu0 %v256
    %325 = vmatmul.bf16.gmra.mxu0 %v105
    %v326 = vpop.f32.mrf.mxu0
    %v327 = vadd.f32 %v314, %v326
    %v328 = vpop.f32.mrf.mxu0
    %329 = vdwg.mxu0
    %330 = vmatpush.bf16.msra.mxu0 %v255
    %331 = vmatpush.bf16.msra.mxu0 %v253
    %332 = vmatpush.bf16.msra.mxu0 %v251
    %333 = vmatpush.bf16.msra.mxu0 %v249
    %334 = vmatpush.bf16.msra.mxu0 %v247
    %335 = vmatpush.bf16.msra.mxu0 %v245
    %336 = vmatpush.bf16.msra.mxu0 %v243
    %337 = vmatpush.bf16.msra.mxu0 %v241
    %338 = vmatmul.bf16.gmra.mxu0 %v104
    %v339 = vpop.f32.mrf.mxu0
    %v340 = vadd.f32 %v141, %v339
    %v341 = vpop.f32.mrf.mxu0
    %342 = vdwg.mxu0
    %343 = vmatpush.bf16.msra.mxu0 %v271
    %344 = vmatpush.bf16.msra.mxu0 %v269
    %345 = vmatpush.bf16.msra.mxu0 %v267
    %346 = vmatpush.bf16.msra.mxu0 %v265
    %347 = vmatpush.bf16.msra.mxu0 %v263
    %348 = vmatpush.bf16.msra.mxu0 %v261
    %349 = vmatpush.bf16.msra.mxu0 %v259
    %350 = vmatpush.bf16.msra.mxu0 %v257
    %351 = vmatmul.bf16.gmra.mxu0 %v105
    %v352 = vpop.f32.mrf.mxu0
    %v353 = vadd.f32 %v340, %v352
    %v354 = vpop.f32.mrf.mxu0
    %355 = vdwg.mxu0
    %v356 = vmax.f32 %v327, 0.0
    %v357 = vmax.f32 %v353, 0.0
    %v358 = vpack.c.bf16 %v356, %v356
    %v359 = vpack.c.bf16 %v357, %v357
    %v360 = vld [vmem:[%s5] sm:$0xf]
    %v361 = vld [vmem:[%s5 + $0x4] sm:$0xf]
    %v362 = vld [vmem:[%s5 + $0x8] sm:$0xf]
    %v363 = vld [vmem:[%s5 + $0xc] sm:$0xf]
    %v364 = vld [vmem:[%s5 + $0x10] sm:$0xf]
    %v365 = vld [vmem:[%s5 + $0x14] sm:$0xf]
    %v366 = vld [vmem:[%s5 + $0x18] sm:$0xf]
    %v367 = vld [vmem:[%s5 + $0x1c] sm:$0xf]
    %v368 = vld [vmem:[%s5 + $0x20] sm:$0xf]
    %v369 = vld [vmem:[%s5 + $0x24] sm:$0xf]
    %v370 = vld [vmem:[%s5 + $0x28] sm:$0xf]
    %v371 = vld [vmem:[%s5 + $0x2c] sm:$0xf]
    %v372 = vld [vmem:[%s5 + $0x30] sm:$0xf]
    %v373 = vld [vmem:[%s5 + $0x34] sm:$0xf]
    %v374 = vld [vmem:[%s5 + $0x38] sm:$0xf]
    %v375 = vld [vmem:[%s5 + $0x3c] sm:$0xf]
    %v376 = vld [vmem:[%s5 + $0x40] sm:$0xf]
    %v377 = vld [vmem:[%s5 + $0x44] sm:$0xf]
    %v378 = vld [vmem:[%s5 + $0x48] sm:$0xf]
    %v379 = vld [vmem:[%s5 + $0x4c] sm:$0xf]
    %v380 = vld [vmem:[%s5 + $0x50] sm:$0xf]
    %v381 = vld [vmem:[%s5 + $0x54] sm:$0xf]
    %v382 = vld [vmem:[%s5 + $0x58] sm:$0xf]
    %v383 = vld [vmem:[%s5 + $0x5c] sm:$0xf]
    %v384 = vld [vmem:[%s5 + $0x60] sm:$0xf]
    %v385 = vld [vmem:[%s5 + $0x64] sm:$0xf]
    %v386 = vld [vmem:[%s5 + $0x68] sm:$0xf]
    %v387 = vld [vmem:[%s5 + $0x6c] sm:$0xf]
    %v388 = vld [vmem:[%s5 + $0x70] sm:$0xf]
    %v389 = vld [vmem:[%s5 + $0x74] sm:$0xf]
    %v390 = vld [vmem:[%s5 + $0x78] sm:$0xf]
    %v391 = vld [vmem:[%s5 + $0x7c] sm:$0xf]
    %v392 = vld [vmem:[%s6] sm:$0x1]
    %v394 = vperm.slane %v392, 0
    %v428 = vunpack.c.l.b16 %v360
    %v429 = vunpack.c.l.b16 %v361
    %v430 = vunpack.c.l.b16 %v362
    %v431 = vunpack.c.l.b16 %v363
    %v432 = vunpack.c.l.b16 %v364
    %v433 = vunpack.c.l.b16 %v365
    %v434 = vunpack.c.l.b16 %v366
    %v435 = vunpack.c.l.b16 %v367
    %v436 = vunpack.c.l.b16 %v368
    %v437 = vunpack.c.l.b16 %v369
    %v438 = vunpack.c.l.b16 %v370
    %v439 = vunpack.c.l.b16 %v371
    %v440 = vunpack.c.l.b16 %v372
    %v441 = vunpack.c.l.b16 %v373
    %v442 = vunpack.c.l.b16 %v374
    %v443 = vunpack.c.l.b16 %v375
    %v444 = vunpack.c.l.b16 %v376
    %v445 = vunpack.c.l.b16 %v377
    %v446 = vunpack.c.l.b16 %v378
    %v447 = vunpack.c.l.b16 %v379
    %v448 = vunpack.c.l.b16 %v380
    %v449 = vunpack.c.l.b16 %v381
    %v450 = vunpack.c.l.b16 %v382
    %v451 = vunpack.c.l.b16 %v383
    %v452 = vunpack.c.l.b16 %v384
    %v453 = vunpack.c.l.b16 %v385
    %v454 = vunpack.c.l.b16 %v386
    %v455 = vunpack.c.l.b16 %v387
    %v456 = vunpack.c.l.b16 %v388
    %v457 = vunpack.c.l.b16 %v389
    %v458 = vunpack.c.l.b16 %v390
    %v459 = vunpack.c.l.b16 %v391
    %v460 = vpack.c.b16 %v429, %v428
    %v461 = vpack.c.b16 %v431, %v430
    %v462 = vpack.c.b16 %v433, %v432
    %v463 = vpack.c.b16 %v435, %v434
    %v464 = vpack.c.b16 %v437, %v436
    %v465 = vpack.c.b16 %v439, %v438
    %v466 = vpack.c.b16 %v441, %v440
    %v467 = vpack.c.b16 %v443, %v442
    %v468 = vpack.c.b16 %v445, %v444
    %v469 = vpack.c.b16 %v447, %v446
    %v470 = vpack.c.b16 %v449, %v448
    %v471 = vpack.c.b16 %v451, %v450
    %v472 = vpack.c.b16 %v453, %v452
    %v473 = vpack.c.b16 %v455, %v454
    %v474 = vpack.c.b16 %v457, %v456
    %v475 = vpack.c.b16 %v459, %v458
    %492 = vmatpush.bf16.msra.mxu0 %v467
    %493 = vmatpush.bf16.msra.mxu0 %v466
    %494 = vmatpush.bf16.msra.mxu0 %v465
    %495 = vmatpush.bf16.msra.mxu0 %v464
    %496 = vmatpush.bf16.msra.mxu0 %v463
    %497 = vmatpush.bf16.msra.mxu0 %v462
    %498 = vmatpush.bf16.msra.mxu0 %v461
    %499 = vmatpush.bf16.msra.mxu0 %v460
    %500 = vmatmul.bf16.gmra.mxu0 %v358
    %v501 = vpop.f32.mrf.mxu0
    %v502 = vadd.f32 %v394, %v501
    %v503 = vpop.f32.mrf.mxu0
    %504 = vdwg.mxu0
    %505 = vmatpush.bf16.msra.mxu0 %v475
    %506 = vmatpush.bf16.msra.mxu0 %v474
    %507 = vmatpush.bf16.msra.mxu0 %v473
    %508 = vmatpush.bf16.msra.mxu0 %v472
    %509 = vmatpush.bf16.msra.mxu0 %v471
    %510 = vmatpush.bf16.msra.mxu0 %v470
    %511 = vmatpush.bf16.msra.mxu0 %v469
    %512 = vmatpush.bf16.msra.mxu0 %v468
    %513 = vmatmul.bf16.gmra.mxu0 %v359
    %v514 = vpop.f32.mrf.mxu0
    %v515 = vadd.f32 %v502, %v514
    %v516 = vpop.f32.mrf.mxu0
    %517 = vdwg.mxu0
    %v518 = vtanh.pop %v515
    %vm519 = vcmask 17408
    %520 = vst.msk [vmem:[#allocation5] sm:$0x3] %vm519, %v518
    // Predicated region
    $region34: #{actor_forward.1} parent=1 // pred_check
      _
    $region35: #{actor_forward.1} parent=1 // pred_check_branch
      %522 = sbr.rel (0) target = $region37
    $region36: #{actor_forward.1} parent=1 // pred_region
      %524 = vsyncadd [#allocation4], 0
      %s526 = sshll.u32 [#allocation5], 4
      %s527 = int_to_ptr.vmem [resolvable:$true] %s526
      %s528 = sshll.u32 %s7, 4
      %s529 = int_to_ptr.hbm [resolvable:$true] %s528
      %531 = dma.vmem_to_hbm [thread:$0]  %s527, 32, %s529, [#allocation4]
    $region37: #{actor_forward.1} parent=1 // pred_fallthru
      _
    // Predicated region
    $region38: #{actor_forward.1} parent=1 // pred_check
      _
    $region39: #{actor_forward.1} parent=1 // pred_check_branch
      %533 = sbr.rel (0) target = $region41
    $region40: #{actor_forward.1} parent=1 // pred_region
      %535 = dma.done [#allocation4], 32
    $region41: #{actor_forward.1} parent=1 // pred_fallthru
      _
    %536 = vsyncpa [#allocation3], 1
    %537 = vsyncpa [#allocation4], 1

</llo_original>
